<compile_context>
chip_gen: v6e
topology: v6e:2x2x1
jax: 0.10.0
libtpu: 0.0.40
codegen_flags: <defaults>
</compile_context>

<pallas_src>
import jax
import jax.numpy as jnp
from jax.experimental import pallas as pl
from jax.experimental.pallas import tpu as pltpu

# ----------------------------- configuration --------------------------------
B = 2              # batch
PRE_CLIPS = 32     # raw clips before featpool average pooling
INPUT_DIM = 64     # raw video feature dim
HIDDEN = 32        # hidden / embed_size (512 in the paper; small here)
NUM_CLIPS = 16     # cfg.MODEL.CCA.NUM_CLIPS  (also cut_dim)
NUM_ATTR = 8       # cfg.num_attribute (concept_dim)
CONCEPT_IN = 24    # cfg.input_channel (concept word-embedding dim)
MAX_WORDS = 6      # query length
WORD_DIM = 16      # query word-embedding dim
NHEAD = 8
D_MODEL = NUM_CLIPS + NUM_ATTR          # 24, divisible by nhead=8
FFN_DIM = 64       # TODO(synk): PyTorch TransformerEncoderLayer default is 2048


# ----------------------------- Pallas kernels --------------------------------
def _cgcn_kernel(adj_ref, x_ref, w1_ref, w2_ref, o_ref):
    """Both C_GCN graph-conv layers fused: adj@(x@W1) -> leaky_relu -> adj@(h@W2) -> L2-norm."""
    h = jnp.dot(x_ref[...], w1_ref[...], preferred_element_type=jnp.float32)
    h = jnp.dot(adj_ref[...], h, preferred_element_type=jnp.float32)
    h = jnp.where(h >= 0.0, h, 0.2 * h)                      # leaky_relu(0.2)
    h = jnp.dot(h, w2_ref[...], preferred_element_type=jnp.float32)
    h = jnp.dot(adj_ref[...], h, preferred_element_type=jnp.float32)
    ss = jnp.sum(h * h, axis=-1, keepdims=True)
    # x / max(||x||, eps)  ==  x * rsqrt(max(ss, eps^2))
    o_ref[...] = h * jax.lax.rsqrt(jnp.maximum(ss, 1e-24))


def _scores_kernel(feats_ref, sel_ref, w_ref, fb_ref, ql_ref, mask_ref, out_ref):
    """CCA scores (eval branch): feat2d + simpredictor fuse conv + v2t/t2v fused.

    Per grid step (b, t):
      feats_ref : (1, C, N)      video features for batch b
      sel_ref   : (N, TILE)      precomputed segment-mean selection matrix slab
      w_ref     : (C, C)         1x1 fuse-conv weight (out, in)  [weight-stationary]
      fb_ref    : (C, 1)         fuse-conv bias
      ql_ref    : (1, 4, 4C)     block-diagonal query LHS (v_t folded in)
      mask_ref  : (1, TILE)      flattened mask2d slab
      out_ref   : (1, 1, TILE)   score slab (lane-dense store)
    """
    f = feats_ref[0]                                               # (C, N)
    # feat2d tile rebuilt on the MXU: map[c, i*N+j] = mean(feats[c, i..j]) masked.
    m = jnp.dot(f, sel_ref[...], preferred_element_type=jnp.float32)       # (C, TILE)
    # simpredictor 1x1 fuse conv (channel-first) + bias + ReLU -> map2d_fused slab
    # TODO(synk): at paper scale on v6e/v7x cast w/m to bf16 here (f32 accumulate).
    mf = jnp.dot(w_ref[...], m, preferred_element_type=jnp.float32) + fb_ref[...]
    mf = jnp.maximum(mf, 0.0)                                              # (C, TILE)

    # All four channel reductions as ONE MXU dot against the block-diagonal
    # query LHS:  rows of red = [vt*num_v, sq_v, (1-vt)*num_t, sq_t].
    r = jnp.concatenate([mf, mf * mf, m, m * m], axis=0)                   # (4C, TILE)
    red = jnp.dot(ql_ref[0], r, preferred_element_type=jnp.float32)        # (4, TILE)

    # sum_c(x / max(||x||, eps)) == num * rsqrt(max(sq, eps^2))   (eps = 1e-12)
    v2t = red[0:1] * jax.lax.rsqrt(jnp.maximum(red[1:2], 1e-24))
    t2v = red[2:3] * jax.lax.rsqrt(jnp.maximum(red[3:4], 1e-24))
    out_ref[0] = jax.nn.sigmoid(v2t + t2v) * mask_ref[...]                 # (1, TILE)


def _pick_tile(nn_):
    """Largest lane-dense tile that still gives >=2 tiles along N*N (1024 at paper scale)."""
    for t in (1024, 512, 256, 128):
        if nn_ % t == 0 and nn_ >= 2 * t:
            return t
    return nn_


def cca_scores_pallas(feats, queries, queries_fused, sel, mask2d,
                      fuse_w, fuse_b, v_t_param):
    """Gridded scores kernel: grid=(B, NN//TILE), both axes parallel."""
    b, c, n = feats.shape
    nn_ = n * n
    tile = _pick_tile(nn_)
    assert nn_ % tile == 0
    grid = (b, nn_ // tile)

    # Block-diagonal query LHS so one MXU dot covers num_v / sq_v / num_t / sq_t;
    # v_t and (1 - v_t) are folded into the numerator rows (rsqrt is scale-free).
    vt = jnp.asarray(v_t_param, jnp.float32)
    z = jnp.zeros_like(queries)
    ql = jnp.stack([
        jnp.concatenate([vt * queries, z, z, z], axis=1),
        jnp.concatenate([z, queries * queries, z, z], axis=1),
        jnp.concatenate([z, z, (1.0 - vt) * queries_fused, z], axis=1),
        jnp.concatenate([z, z, z, queries_fused * queries_fused], axis=1),
    ], axis=1)                                                   # (B, 4, 4C)

    mask_flat = mask2d.reshape(1, nn_)

    ce = pl.CostEstimate(
        flops=int(2 * b * nn_ * (c * n + c * c + 4 * 4 * c)),
        transcendentals=int(3 * b * nn_),
        bytes_accessed=int(4 * (b * c * n + n * nn_ + c * c + c
                                + b * 4 * 4 * c + nn_ + b * nn_)))

    out = pl.pallas_call(
        _scores_kernel,
        out_shape=jax.ShapeDtypeStruct((b, 1, nn_), jnp.float32),
        grid=grid,
        in_specs=[
            pl.BlockSpec((1, c, n), lambda bi, ti: (bi, 0, 0)),       # feats (per-b)
            pl.BlockSpec((n, tile), lambda bi, ti: (0, ti)),          # feat2d selection slab
            pl.BlockSpec((c, c), lambda bi, ti: (0, 0)),              # fuse conv W (stationary)
            pl.BlockSpec((c, 1), lambda bi, ti: (0, 0)),              # fuse conv bias
            pl.BlockSpec((1, 4, 4 * c), lambda bi, ti: (bi, 0, 0)),   # query LHS (per-b)
            pl.BlockSpec((1, tile), lambda bi, ti: (0, ti)),          # mask slab
        ],
        out_specs=pl.BlockSpec((1, 1, tile), lambda bi, ti: (bi, 0, ti)),
        compiler_params=pltpu.CompilerParams(
            dimension_semantics=("parallel", "parallel"),
            # TODO(synk): at paper scale (C=512, N=64) re-derive TILE per chip:
            # keep (4C x TILE x 4B) x 2 buffers well under the scoped limit
            # (16 MiB default v5e, 32 MiB v6e/v7x).
            vmem_limit_bytes=32 * 1024 * 1024),
        cost_estimate=ce,
    )(feats, sel, fuse_w, fuse_b, ql, mask_flat)
    return out.reshape(b, n, n)


# ------------------------------ sub-modules -----------------------------------
def layer_norm(x, g, b, eps=1e-5):
    mu = jnp.mean(x, axis=-1, keepdims=True)
    var = jnp.mean((x - mu) ** 2, axis=-1, keepdims=True)
    return (x - mu) / jnp.sqrt(var + eps) * g + b


def c_gcn(concept_embs, params):
    """C_GCN: two graph-conv layers over the concept adjacency (one fused Pallas kernel).
    TODO(synk): original builds the adjacency from co-occurrence stats in adj_file;
    a deterministic normalized adjacency is used here."""
    return pl.pallas_call(
        _cgcn_kernel,
        out_shape=jax.ShapeDtypeStruct((NUM_ATTR, HIDDEN), jnp.float32),
    )(params["adj"], concept_embs, params["gc1_w"], params["gc2_w"])


def featpool(feats_raw, params):
    """Conv1d(1x1) + ReLU + AvgPool over clips.  Sub-MXU shapes -> left to XLA."""
    b, p, d = feats_raw.shape
    x = jnp.maximum(feats_raw.reshape(b * p, d) @ params["pool_w"] + params["pool_b"], 0.0)
    x = x.reshape(b, NUM_CLIPS, p // NUM_CLIPS, HIDDEN).mean(axis=2)     # (B, NC, C)
    return jnp.transpose(x, (0, 2, 1))                                   # (B, C, NC)


def transformer_encoder_layer(x, params):
    """Post-norm nn.TransformerEncoderLayer (eval, dropout disabled).
    Input interpreted as PyTorch (S, N, E) = (B, C, D_MODEL).  Tiny matmuls -> XLA."""
    s, n, e = x.shape
    h = NHEAD
    dh = e // h
    x2 = x.reshape(s * n, e)
    qkv = x2 @ params["Wqkv"] + params["bqkv"]                            # (S*N, 3E)
    q, k, v = qkv[:, :e], qkv[:, e:2 * e], qkv[:, 2 * e:]

    def split(t):
        return t.reshape(s, n, h, dh).transpose(1, 2, 0, 3)               # (N, H, S, Dh)

    qh, kh, vh = split(q), split(k), split(v)
    attn = jnp.einsum("nhsd,nhtd->nhst", qh, kh) / jnp.sqrt(jnp.float32(dh))
    attn = jax.nn.softmax(attn, axis=-1)
    ctx = jnp.einsum("nhst,nhtd->nhsd", attn, vh)                         # (N, H, S, Dh)
    ctx = ctx.transpose(2, 0, 1, 3).reshape(s * n, e)
    out = (ctx @ params["Wo"] + params["bo"]).reshape(s, n, e)

    x = layer_norm(x + out, params["ln1_g"], params["ln1_b"])
    ff = jnp.maximum(x.reshape(s * n, e) @ params["W1"] + params["b1"], 0.0)
    ff = ff @ params["W2"] + params["b2"]
    x = layer_norm(x + ff.reshape(s, n, e), params["ln2_g"], params["ln2_b"])
    return x


def simpredictor_text(queries_raw, wordlens, params):
    """Text-encoder half of simpredictor; the 1x1 map-fusion conv runs inside the
    scores kernel so map2d_fused never round-trips HBM.
    TODO(synk): original uses an LSTM text encoder; length-masked mean pooling
    + linear is used here."""
    b, w, dw = queries_raw.shape
    mask = (jnp.arange(w)[None, :] < wordlens[:, None]).astype(jnp.float32)
    mean = (queries_raw * mask[:, :, None]).sum(axis=1) / jnp.maximum(
        wordlens[:, None].astype(jnp.float32), 1.0)
    return mean @ params["txt_w"] + params["txt_b"]                       # (B, C)


def fuse_attention(queries, concept_basis, params):
    """FuseAttention(512, 512, True): queries attend over the concept basis.
    TODO(synk): exact FuseAttention definition unavailable; single-head scaled
    dot-product attention + residual + layernorm."""
    qk = queries @ params["fa_wq"]
    ck = concept_basis @ params["fa_wk"]
    cv = concept_basis @ params["fa_wv"]
    logits = (qk @ ck.T) / jnp.sqrt(jnp.float32(HIDDEN))
    w_att = jax.nn.softmax(logits, axis=-1)                               # (B, A)
    attn = w_att @ cv                                                     # (B, C)
    return layer_norm(queries + attn, params["fa_g"], params["fa_b"])


# ------------------------------- full forward ---------------------------------
def cca_forward(feats_raw, concept_input_embs, queries_raw, wordlens, params):
    concept_basis = c_gcn(concept_input_embs, params)            # (A, C)
    feats = featpool(feats_raw, params)                          # (B, C, NC)

    cb = jnp.broadcast_to(concept_basis.T[None], (feats.shape[0], HIDDEN, NUM_ATTR))
    feats = jnp.concatenate([feats, cb], axis=2)                 # (B, C, NC+A)
    feats = transformer_encoder_layer(feats, params)[:, :, :NUM_CLIPS]   # (B, C, N)

    queries = simpredictor_text(queries_raw, wordlens, params)   # (B, C)
    queries_fused = fuse_attention(queries, concept_basis, params)

    # eval branch of CCA.forward (training branch needs ccaloss / ious2d);
    # feat2d + simpredictor fuse conv + v2t/t2v + sigmoid*mask fused in one kernel.
    scores2d = cca_scores_pallas(feats, queries, queries_fused,
                                 params["feat2d_sel"], params["mask2d"],
                                 params["fuse_w"], params["fuse_b"],
                                 params["v_t_param"])
    return scores2d                                              # (B, N, N)


# --------------------------------- params -------------------------------------
def _build_feat2d_selection(n):
    """Selection matrix S (N, N*N): (feats @ S)[c, i*N+j] = mean(feats[c, i..j]),
    zero for j < i (mask2d folded in).
    TODO(synk): original feat2d uses sparse max-pooling with layered strides;
    the mean-pool map keeps the same shape/mask semantics."""
    ii = jnp.arange(n)[:, None]
    jj = jnp.arange(n)[None, :]
    valid = jj >= ii
    length = jnp.maximum(jj - ii + 1, 1).astype(jnp.float32)
    coef = jnp.where(valid, 1.0 / length, 0.0)                   # (N, N)
    rr = jnp.arange(n)[:, None, None]
    sel = jnp.where((rr >= ii[None]) & (rr <= jj[None]), coef[None], 0.0)
    return sel.reshape(n, n * n).astype(jnp.float32)


def init_params(key):
    ks = jax.random.split(key, 24)

    def w(k, shape, scale=0.05):
        return (scale * jax.random.normal(k, shape)).astype(jnp.float32)

    # deterministic normalized adjacency for C_GCN (threshold t=0.3 analogue)
    a_raw = jax.random.uniform(ks[0], (NUM_ATTR, NUM_ATTR))
    a_raw = (a_raw + a_raw.T) / 2.0
    a_bin = (a_raw > 0.3).astype(jnp.float32) + jnp.eye(NUM_ATTR, dtype=jnp.float32)
    adj = a_bin / jnp.sum(a_bin, axis=-1, keepdims=True)

    params = dict(
        adj=adj,
        gc1_w=w(ks[1], (CONCEPT_IN, HIDDEN)),
        gc2_w=w(ks[2], (HIDDEN, HIDDEN)),
        pool_w=w(ks[3], (INPUT_DIM, HIDDEN)),
        pool_b=jnp.zeros((HIDDEN,), jnp.float32),
        Wqkv=w(ks[4], (D_MODEL, 3 * D_MODEL)),
        bqkv=jnp.zeros((3 * D_MODEL,), jnp.float32),
        Wo=w(ks[7], (D_MODEL, D_MODEL)), bo=jnp.zeros((D_MODEL,), jnp.float32),
        W1=w(ks[8], (D_MODEL, FFN_DIM)), b1=jnp.zeros((FFN_DIM,), jnp.float32),
        W2=w(ks[9], (FFN_DIM, D_MODEL)), b2=jnp.zeros((D_MODEL,), jnp.float32),
        ln1_g=jnp.ones((D_MODEL,), jnp.float32), ln1_b=jnp.zeros((D_MODEL,), jnp.float32),
        ln2_g=jnp.ones((D_MODEL,), jnp.float32), ln2_b=jnp.zeros((D_MODEL,), jnp.float32),
        txt_w=w(ks[10], (WORD_DIM, HIDDEN)), txt_b=jnp.zeros((HIDDEN,), jnp.float32),
        # fuse conv stored directly in kernel layout (C_out, C_in) / (C, 1):
        # no transpose / reshape on the hot path.
        fuse_w=w(ks[11], (HIDDEN, HIDDEN)),
        fuse_b=jnp.zeros((HIDDEN, 1), jnp.float32),
        fa_wq=w(ks[12], (HIDDEN, HIDDEN)),
        fa_wk=w(ks[13], (HIDDEN, HIDDEN)),
        fa_wv=w(ks[14], (HIDDEN, HIDDEN)),
        fa_g=jnp.ones((HIDDEN,), jnp.float32), fa_b=jnp.zeros((HIDDEN,), jnp.float32),
        v_t_param=jnp.float32(0.5),                       # nn.Parameter([0.5])
        mask2d=jnp.triu(jnp.ones((NUM_CLIPS, NUM_CLIPS), jnp.float32)),
        feat2d_sel=_build_feat2d_selection(NUM_CLIPS),
    )
    return params


# ---------------------------------- main ---------------------------------------
if __name__ == "__main__":
    key = jax.random.PRNGKey(0)
    k_p, k_f, k_c, k_q = jax.random.split(key, 4)

    params = init_params(k_p)
    feats_raw = jax.random.normal(k_f, (B, PRE_CLIPS, INPUT_DIM), jnp.float32)
    concept_input_embs = jax.random.normal(k_c, (NUM_ATTR, CONCEPT_IN), jnp.float32)
    queries_raw = jax.random.normal(k_q, (B, MAX_WORDS, WORD_DIM), jnp.float32)
    wordlens = jnp.array([4, 6], jnp.int32)

    fwd = jax.jit(cca_forward)
    scores = fwd(feats_raw, concept_input_embs, queries_raw, wordlens, params)
    scores = jax.block_until_ready(scores)

    assert scores.shape == (B, NUM_CLIPS, NUM_CLIPS)
    assert bool(jnp.all(jnp.isfinite(scores)))
    print("KERNEL_OK")
</pallas_src>

<mosaic_0001>
module attributes {stable_mosaic.version = 11 : i64} {
  func.func @_cgcn_kernel(%arg0: memref<8x8xf32, #tpu.memory_space<vmem>>, %arg1: memref<8x24xf32, #tpu.memory_space<vmem>>, %arg2: memref<24x32xf32, #tpu.memory_space<vmem>>, %arg3: memref<32x32xf32, #tpu.memory_space<vmem>>, %arg4: memref<8x32xf32, #tpu.memory_space<vmem>>) attributes {dimension_semantics = [], scalar_prefetch = 0 : i64, scratch_operands = 0 : i64, tpu.core_type = #tpu.core_type<tc>} {
    %c0 = arith.constant 0 : index
    %c0_0 = arith.constant 0 : index
    %0 = vector.load %arg1[%c0, %c0_0] : memref<8x24xf32, #tpu.memory_space<vmem>>, vector<8x24xf32>
    %c0_1 = arith.constant 0 : index
    %c0_2 = arith.constant 0 : index
    %1 = vector.load %arg2[%c0_1, %c0_2] : memref<24x32xf32, #tpu.memory_space<vmem>>, vector<24x32xf32>
    %cst = arith.constant dense<0.000000e+00> : vector<8x32xf32>
    %2 = tpu.matmul %0, %1, %cst {dimension_numbers = #tpu.dot_dimension_numbers<[1], [0], [0], [1], [0, 0, 1, 1], [], []>} : vector<8x24xf32>, vector<24x32xf32>, vector<8x32xf32> -> vector<8x32xf32>
    %c0_3 = arith.constant 0 : index
    %c0_4 = arith.constant 0 : index
    %3 = vector.load %arg0[%c0_3, %c0_4] : memref<8x8xf32, #tpu.memory_space<vmem>>, vector<8x8xf32>
    %cst_5 = arith.constant dense<0.000000e+00> : vector<8x32xf32>
    %4 = tpu.matmul %3, %2, %cst_5 {dimension_numbers = #tpu.dot_dimension_numbers<[1], [0], [0], [1], [0, 0, 1, 1], [], []>} : vector<8x8xf32>, vector<8x32xf32>, vector<8x32xf32> -> vector<8x32xf32>
    %cst_6 = arith.constant 0.000000e+00 : f32
    %5 = vector.broadcast %cst_6 : f32 to vector<8x32xf32>
    %6 = arith.cmpf oge, %4, %5 : vector<8x32xf32>
    %cst_7 = arith.constant 2.000000e-01 : f32
    %7 = vector.broadcast %cst_7 : f32 to vector<8x32xf32>
    %8 = arith.mulf %7, %4 : vector<8x32xf32>
    %9 = arith.select %6, %4, %8 : vector<8x32xi1>, vector<8x32xf32>
    %c0_8 = arith.constant 0 : index
    %c0_9 = arith.constant 0 : index
    %10 = vector.load %arg3[%c0_8, %c0_9] : memref<32x32xf32, #tpu.memory_space<vmem>>, vector<32x32xf32>
    %cst_10 = arith.constant dense<0.000000e+00> : vector<8x32xf32>
    %11 = tpu.matmul %9, %10, %cst_10 {dimension_numbers = #tpu.dot_dimension_numbers<[1], [0], [0], [1], [0, 0, 1, 1], [], []>} : vector<8x32xf32>, vector<32x32xf32>, vector<8x32xf32> -> vector<8x32xf32>
    %c0_11 = arith.constant 0 : index
    %c0_12 = arith.constant 0 : index
    %12 = vector.load %arg0[%c0_11, %c0_12] : memref<8x8xf32, #tpu.memory_space<vmem>>, vector<8x8xf32>
    %cst_13 = arith.constant dense<0.000000e+00> : vector<8x32xf32>
    %13 = tpu.matmul %12, %11, %cst_13 {dimension_numbers = #tpu.dot_dimension_numbers<[1], [0], [0], [1], [0, 0, 1, 1], [], []>} : vector<8x8xf32>, vector<8x32xf32>, vector<8x32xf32> -> vector<8x32xf32>
    %14 = arith.mulf %13, %13 : vector<8x32xf32>
    %cst_14 = arith.constant dense<0.000000e+00> : vector<8xf32>
    %15 = vector.multi_reduction <add>, %14, %cst_14 [1] : vector<8x32xf32> to vector<8xf32>
    %16 = vector.shape_cast %15 : vector<8xf32> to vector<8x1xf32>
    %cst_15 = arith.constant 1.000000e-24 : f32
    %17 = vector.broadcast %cst_15 : f32 to vector<8x1xf32>
    %18 = arith.maximumf %16, %17 : vector<8x1xf32>
    %19 = math.rsqrt %18 : vector<8x1xf32>
    %20 = vector.broadcast %19 : vector<8x1xf32> to vector<8x32xf32>
    %21 = arith.mulf %13, %20 : vector<8x32xf32>
    %c0_16 = arith.constant 0 : index
    %c0_17 = arith.constant 0 : index
    %22 = vector.load %arg4[%c0_16, %c0_17] : memref<8x32xf32, #tpu.memory_space<vmem>>, vector<8x32xf32>
    tpu.vector_store %arg4[%c0_16, %c0_17], %21 {strides = array<i32>} : memref<8x32xf32, #tpu.memory_space<vmem>>, vector<8x32xf32>,
    return
  }
}

module attributes {stable_mosaic.version = 11 : i64} {
  func.func @_scores_kernel(%arg0: i32, %arg1: i32, %arg2: memref<1x32x16xf32, #tpu.memory_space<vmem>>, %arg3: memref<16x128xf32, #tpu.memory_space<vmem>>, %arg4: memref<32x32xf32, #tpu.memory_space<vmem>>, %arg5: memref<32x1xf32, #tpu.memory_space<vmem>>, %arg6: memref<1x4x128xf32, #tpu.memory_space<vmem>>, %arg7: memref<1x128xf32, #tpu.memory_space<vmem>>, %arg8: memref<1x1x128xf32, #tpu.memory_space<vmem>>) attributes {dimension_semantics = [#tpu.dimension_semantics<parallel>, #tpu.dimension_semantics<parallel>], iteration_bounds = array<i64: 2, 2>, scalar_prefetch = 0 : i64, scratch_operands = 0 : i64, tpu.core_type = #tpu.core_type<tc>, window_params = [{transform_indices = @transform_0, window_bounds = array<i64: 1, 32, 16>}, {transform_indices = @transform_1, window_bounds = array<i64: 16, 128>}, {pipeline_mode = #tpu.pipeline_mode<synchronous>, transform_indices = @transform_2, window_bounds = array<i64: 32, 32>}, {pipeline_mode = #tpu.pipeline_mode<synchronous>, transform_indices = @transform_3, window_bounds = array<i64: 32, 1>}, {transform_indices = @transform_4, window_bounds = array<i64: 1, 4, 128>}, {transform_indices = @transform_5, window_bounds = array<i64: 1, 128>}, {transform_indices = @transform_6, window_bounds = array<i64: 1, 1, 128>}]} {
    %c0 = arith.constant 0 : index
    %c0_0 = arith.constant 0 : index
    %c0_1 = arith.constant 0 : index
    %0 = vector.load %arg2[%c0, %c0_0, %c0_1] : memref<1x32x16xf32, #tpu.memory_space<vmem>>, vector<1x32x16xf32>
    %1 = vector.shape_cast %0 : vector<1x32x16xf32> to vector<32x16xf32>
    %c0_2 = arith.constant 0 : index
    %c0_3 = arith.constant 0 : index
    %2 = vector.load %arg3[%c0_2, %c0_3] : memref<16x128xf32, #tpu.memory_space<vmem>>, vector<16x128xf32>
    %cst = arith.constant dense<0.000000e+00> : vector<32x128xf32>
    %3 = tpu.matmul %1, %2, %cst {dimension_numbers = #tpu.dot_dimension_numbers<[1], [0], [0], [1], [0, 0, 1, 1], [], []>} : vector<32x16xf32>, vector<16x128xf32>, vector<32x128xf32> -> vector<32x128xf32>
    %c0_4 = arith.constant 0 : index
    %c0_5 = arith.constant 0 : index
    %4 = vector.load %arg4[%c0_4, %c0_5] : memref<32x32xf32, #tpu.memory_space<vmem>>, vector<32x32xf32>
    %cst_6 = arith.constant dense<0.000000e+00> : vector<32x128xf32>
    %5 = tpu.matmul %4, %3, %cst_6 {dimension_numbers = #tpu.dot_dimension_numbers<[1], [0], [0], [1], [0, 0, 1, 1], [], []>} : vector<32x32xf32>, vector<32x128xf32>, vector<32x128xf32> -> vector<32x128xf32>
    %c0_7 = arith.constant 0 : index
    %c0_8 = arith.constant 0 : index
    %6 = vector.load %arg5[%c0_7, %c0_8] : memref<32x1xf32, #tpu.memory_space<vmem>>, vector<32x1xf32>
    %7 = vector.broadcast %6 : vector<32x1xf32> to vector<32x128xf32>
    %8 = arith.addf %5, %7 : vector<32x128xf32>
    %cst_9 = arith.constant 0.000000e+00 : f32
    %9 = vector.broadcast %cst_9 : f32 to vector<32x128xf32>
    %10 = arith.maximumf %8, %9 : vector<32x128xf32>
    %11 = arith.mulf %10, %10 : vector<32x128xf32>
    %12 = arith.mulf %3, %3 : vector<32x128xf32>
    %13 = tpu.concatenate %10, %11, %3, %12 in 0 : vector<32x128xf32>, vector<32x128xf32>, vector<32x128xf32>, vector<32x128xf32> -> vector<128x128xf32>
    %c0_10 = arith.constant 0 : index
    %c0_11 = arith.constant 0 : index
    %c0_12 = arith.constant 0 : index
    %14 = vector.load %arg6[%c0_10, %c0_11, %c0_12] : memref<1x4x128xf32, #tpu.memory_space<vmem>>, vector<1x4x128xf32>
    %15 = vector.shape_cast %14 : vector<1x4x128xf32> to vector<4x128xf32>
    %cst_13 = arith.constant dense<0.000000e+00> : vector<4x128xf32>
    %16 = tpu.matmul %15, %13, %cst_13 {dimension_numbers = #tpu.dot_dimension_numbers<[1], [0], [0], [1], [0, 0, 1, 1], [], []>} : vector<4x128xf32>, vector<128x128xf32>, vector<4x128xf32> -> vector<4x128xf32>
    %17 = vector.extract_strided_slice %16 {offsets = [0, 0], sizes = [1, 128], strides = [1, 1]} : vector<4x128xf32> to vector<1x128xf32>
    %18 = vector.extract_strided_slice %16 {offsets = [1, 0], sizes = [1, 128], strides = [1, 1]} : vector<4x128xf32> to vector<1x128xf32>
    %cst_14 = arith.constant 1.000000e-24 : f32
    %19 = vector.broadcast %cst_14 : f32 to vector<1x128xf32>
    %20 = arith.maximumf %18, %19 : vector<1x128xf32>
    %21 = math.rsqrt %20 : vector<1x128xf32>
    %22 = arith.mulf %17, %21 : vector<1x128xf32>
    %23 = vector.extract_strided_slice %16 {offsets = [2, 0], sizes = [1, 128], strides = [1, 1]} : vector<4x128xf32> to vector<1x128xf32>
    %24 = vector.extract_strided_slice %16 {offsets = [3, 0], sizes = [1, 128], strides = [1, 1]} : vector<4x128xf32> to vector<1x128xf32>
    %cst_15 = arith.constant 1.000000e-24 : f32
    %25 = vector.broadcast %cst_15 : f32 to vector<1x128xf32>
    %26 = arith.maximumf %24, %25 : vector<1x128xf32>
    %27 = math.rsqrt %26 : vector<1x128xf32>
    %28 = arith.mulf %23, %27 : vector<1x128xf32>
    %29 = arith.addf %22, %28 : vector<1x128xf32>
    %30 = arith.negf %29 : vector<1x128xf32>
    %31 = math.exp %30 : vector<1x128xf32>
    %cst_16 = arith.constant 1.000000e+00 : f32
    %32 = vector.broadcast %cst_16 : f32 to vector<1x128xf32>
    %33 = arith.addf %32, %31 : vector<1x128xf32>
    %34 = arith.divf %32, %33 : vector<1x128xf32>
    %c0_17 = arith.constant 0 : index
    %c0_18 = arith.constant 0 : index
    %35 = vector.load %arg7[%c0_17, %c0_18] : memref<1x128xf32, #tpu.memory_space<vmem>>, vector<1x128xf32>
    %36 = arith.mulf %34, %35 : vector<1x128xf32>
    %c0_19 = arith.constant 0 : index
    %c0_20 = arith.constant 0 : index
    %c0_21 = arith.constant 0 : index
    %37 = vector.load %arg8[%c0_19, %c0_20, %c0_21] : memref<1x1x128xf32, #tpu.memory_space<vmem>>, vector<1x1x128xf32>
    %38 = vector.shape_cast %37 : vector<1x1x128xf32> to vector<1x128xf32>
    %39 = vector.shape_cast %36 : vector<1x128xf32> to vector<1x1x128xf32>
    tpu.vector_store %arg8[%c0_19, %c0_20, %c0_21], %39 {strides = array<i32>} : memref<1x1x128xf32, #tpu.memory_space<vmem>>, vector<1x1x128xf32>,
    return
  }
  func.func @transform_0(%arg0: i32, %arg1: i32) -> (i32, i32, i32) {
    %c0_i32 = arith.constant 0 : i32
    %c0_i32_0 = arith.constant 0 : i32
    %c0_i32_1 = arith.constant 0 : i32
    return %arg0, %c0_i32, %c0_i32_0 : i32, i32, i32
  }
  func.func @transform_1(%arg0: i32, %arg1: i32) -> (i32, i32) {
    %c0_i32 = arith.constant 0 : i32
    %c0_i32_0 = arith.constant 0 : i32
    return %c0_i32, %arg1 : i32, i32
  }
  func.func @transform_2(%arg0: i32, %arg1: i32) -> (i32, i32) {
    %c0_i32 = arith.constant 0 : i32
    %c0_i32_0 = arith.constant 0 : i32
    %c0_i32_1 = arith.constant 0 : i32
    return %c0_i32, %c0_i32_0 : i32, i32
  }
  func.func @transform_3(%arg0: i32, %arg1: i32) -> (i32, i32) {
    %c0_i32 = arith.constant 0 : i32
    %c0_i32_0 = arith.constant 0 : i32
    %c0_i32_1 = arith.constant 0 : i32
    return %c0_i32, %c0_i32_0 : i32, i32
  }
  func.func @transform_4(%arg0: i32, %arg1: i32) -> (i32, i32, i32) {
    %c0_i32 = arith.constant 0 : i32
    %c0_i32_0 = arith.constant 0 : i32
    %c0_i32_1 = arith.constant 0 : i32
    return %arg0, %c0_i32, %c0_i32_0 : i32, i32, i32
  }
  func.func @transform_5(%arg0: i32, %arg1: i32) -> (i32, i32) {
    %c0_i32 = arith.constant 0 : i32
    %c0_i32_0 = arith.constant 0 : i32
    return %c0_i32, %arg1 : i32, i32
  }
  func.func @transform_6(%arg0: i32, %arg1: i32) -> (i32, i32, i32) {
    %c0_i32 = arith.constant 0 : i32
    %c0_i32_0 = arith.constant 0 : i32
    return %arg0, %c0_i32, %arg1 : i32, i32, i32
  }
}

</mosaic_0001>

<llo_original>
// kernel: cca_forward.2
$region0: #{cca_forward.2}
  #allocation0 [shape = 'u32[]', space=smem, size = 0x4, offset = 0x4, fixed_abs, tag = 'smem constant byte address 0x4 - core index']
  #allocation1 [shape = 'u32[144,128]{1,0:T(1,128)}', space=vmem, size = 0x12000, scoped, tag = 'internal scratch']
  %s0 = inlined_call_operand.vmem [shape: f32[8,8], index: 0, kind: input, shape index: {}]
  %s1 = inlined_call_operand.vmem [shape: f32[8,24], index: 1, kind: input, shape index: {}]
  %s2 = inlined_call_operand.hbm [shape: f32[24,32], index: 2, kind: input, shape index: {}]
  %s3 = inlined_call_operand.vmem [shape: f32[32,32], index: 3, kind: input, shape index: {}]
  %s4 = inlined_call_operand.vmem [shape: f32[8,32], index: 4, kind: output, shape index: {}]
  %s5 = sld [smem:[#allocation0]]
  $region30: #{cca_forward.2} parent=0
    _
  %s7 = ssub.s32 1, %s5
  %s8 = scalar_select 0, %s7, %s5
  $region1: #{cca_forward.2} parent=0
    #allocation2 [shape = 'u8[12288]{0}', space=vmem, size = 0x3000, scoped, tag = 'input window, operand 2, single buffered']
    #allocation3 [shape = 's32[1]{0}', space=sflag, size = 0x4, scoped, tag = 'scoped memory for cca_forward.2']
    %9 = vsyncpa [#allocation3], 0
    // Predicated region
    $region2: #{cca_forward.2} parent=1 // pred_check
      _
    $region3: #{cca_forward.2} parent=1 // pred_check_branch
      %11 = sbr.rel (0) target = $region5
    $region4: #{cca_forward.2} parent=1 // pred_region
      _
    $region5: #{cca_forward.2} parent=1 // pred_fallthru
      _
    // Predicated region
    $region6: #{cca_forward.2} parent=1 // pred_check
      _
    $region7: #{cca_forward.2} parent=1 // pred_check_branch
      %13 = sbr.rel (0) target = $region9
    $region8: #{cca_forward.2} parent=1 // pred_region
      _
    $region9: #{cca_forward.2} parent=1 // pred_fallthru
      _
    // Predicated region
    $region10: #{cca_forward.2} parent=1 // pred_check
      _
    $region11: #{cca_forward.2} parent=1 // pred_check_branch
      %15 = sbr.rel (0) target = $region13
    $region12: #{cca_forward.2} parent=1 // pred_region
      %s17 = ssub.s32 384, 384
      %18 = vsyncadd [#allocation3], %s17
      %s19 = sshll.u32 [#allocation2], 4
      %s20 = int_to_ptr.vmem [resolvable:$true] %s19
      %25 = dma.hbm_to_vmem [thread:$0]  %s2, 384, %s20, [#allocation3], 128, 128, 8
    $region13: #{cca_forward.2} parent=1 // pred_fallthru
      _
    // Predicated region
    $region14: #{cca_forward.2} parent=1 // pred_check
      _
    $region15: #{cca_forward.2} parent=1 // pred_check_branch
      %27 = sbr.rel (0) target = $region17
    $region16: #{cca_forward.2} parent=1 // pred_region
      _
    $region17: #{cca_forward.2} parent=1 // pred_fallthru
      _
    // Predicated region
    $region18: #{cca_forward.2} parent=1 // pred_check
      _
    $region19: #{cca_forward.2} parent=1 // pred_check_branch
      %29 = sbr.rel (0) target = $region21
    $region20: #{cca_forward.2} parent=1 // pred_region
      %30 = dma.done [#allocation3], 384
    $region21: #{cca_forward.2} parent=1 // pred_fallthru
      _
    %v31 = vld [vmem:[%s1] sm:$0xff]
    %v32 = vld [vmem:[#allocation2] sm:$0xff]
    %v33 = vld [vmem:[#allocation2 + $0x8] sm:$0xff]
    %v34 = vld [vmem:[#allocation2 + $0x10] sm:$0xff]
    %vm35 = vcmask 195584
    %v37 = vsel %vm35, %v31, 0
    %39 = vmatprep.subr.mxu0 0.0
    %40 = vmatpush1.msra.mxu0 0.0
    %41 = vmatprep.subr.mxu0 0.0
    %42 = vmatpush1.msra.mxu0 0.0
    %43 = vmatprep.subr.mxu0 0.0
    %44 = vmatpush1.msra.mxu0 0.0
    %45 = vmatprep.subr.mxu0 0.0
    %46 = vmatpush1.msra.mxu0 0.0
    %47 = vmatprep.subr.mxu0 0.0
    %48 = vmatpush1.msra.mxu0 0.0
    %49 = vmatprep.subr.mxu0 0.0
    %50 = vmatpush1.msra.mxu0 0.0
    %51 = vmatprep.subr.mxu0 0.0
    %52 = vmatpush1.msra.mxu0 0.0
    %53 = vmatprep.subr.mxu0 0.0
    %54 = vmatpush1.msra.mxu0 0.0
    %55 = vmatprep.subr.mxu0 0.0
    %56 = vmatpush1.msra.mxu0 0.0
    %57 = vmatprep.subr.mxu0 0.0
    %58 = vmatpush1.msra.mxu0 0.0
    %59 = vmatprep.subr.mxu0 0.0
    %60 = vmatpush1.msra.mxu0 0.0
    %61 = vmatprep.subr.mxu0 0.0
    %62 = vmatpush1.msra.mxu0 0.0
    %63 = vmatprep.subr.mxu0 0.0
    %64 = vmatpush1.msra.mxu0 0.0
    %65 = vmatprep.subr.mxu0 0.0
    %66 = vmatpush1.msra.mxu0 %v34
    %67 = vmatprep.subr.mxu0 0.0
    %68 = vmatpush1.msra.mxu0 %v33
    %69 = vmatprep.subr.mxu0 0.0
    %70 = vmatpush1.msra.mxu0 %v32
    %71 = vmatprep.subr.mxu0 0.0
    %72 = vmatpush2.msra.mxu0 0.0
    %73 = vmatprep.subr.mxu0 0.0
    %74 = vmatpush2.msra.mxu0 0.0
    %75 = vmatprep.subr.mxu0 0.0
    %76 = vmatpush2.msra.mxu0 0.0
    %77 = vmatprep.subr.mxu0 0.0
    %78 = vmatpush2.msra.mxu0 0.0
    %79 = vmatprep.subr.mxu0 0.0
    %80 = vmatpush2.msra.mxu0 0.0
    %81 = vmatprep.subr.mxu0 0.0
    %82 = vmatpush2.msra.mxu0 0.0
    %83 = vmatprep.subr.mxu0 0.0
    %84 = vmatpush2.msra.mxu0 0.0
    %85 = vmatprep.subr.mxu0 0.0
    %86 = vmatpush2.msra.mxu0 0.0
    %87 = vmatprep.subr.mxu0 0.0
    %88 = vmatpush2.msra.mxu0 0.0
    %89 = vmatprep.subr.mxu0 0.0
    %90 = vmatpush2.msra.mxu0 0.0
    %91 = vmatprep.subr.mxu0 0.0
    %92 = vmatpush2.msra.mxu0 0.0
    %93 = vmatprep.subr.mxu0 0.0
    %94 = vmatpush2.msra.mxu0 0.0
    %95 = vmatprep.subr.mxu0 0.0
    %96 = vmatpush2.msra.mxu0 0.0
    %97 = vmatprep.subr.mxu0 0.0
    %98 = vmatpush2.msra.mxu0 0.0
    %99 = vmatprep.subr.mxu0 0.0
    %100 = vmatpush2.msra.mxu0 0.0
    %101 = vmatprep.subr.mxu0 0.0
    %102 = vmatpush2.msra.mxu0 0.0
    %103 = vmatprep.mubr.f32.mxu0 0.0
    %104 = vmatmul.mubr.f32.gmra.mxu0 %v37
    %v105 = vpop.f32.mrf.mxu0
    %v106 = vadd.f32 0.0, %v105
    %v107 = vpop.f32.mrf.mxu0
    %108 = vdwg.mxu0
    %v109 = vld [vmem:[%s0] sm:$0xff]
    %vm110 = vcmask 64512
    %v112 = vsel %vm110, %v109, 0
    %114 = vmatprep.subr.mxu0 0.0
    %115 = vmatpush1.msra.mxu0 0.0
    %116 = vmatprep.subr.mxu0 0.0
    %117 = vmatpush1.msra.mxu0 0.0
    %118 = vmatprep.subr.mxu0 0.0
    %119 = vmatpush1.msra.mxu0 0.0
    %120 = vmatprep.subr.mxu0 0.0
    %121 = vmatpush1.msra.mxu0 0.0
    %122 = vmatprep.subr.mxu0 0.0
    %123 = vmatpush1.msra.mxu0 0.0
    %124 = vmatprep.subr.mxu0 0.0
    %125 = vmatpush1.msra.mxu0 0.0
    %126 = vmatprep.subr.mxu0 0.0
    %127 = vmatpush1.msra.mxu0 0.0
    %128 = vmatprep.subr.mxu0 0.0
    %129 = vmatpush1.msra.mxu0 0.0
    %130 = vmatprep.subr.mxu0 0.0
    %131 = vmatpush1.msra.mxu0 0.0
    %132 = vmatprep.subr.mxu0 0.0
    %133 = vmatpush1.msra.mxu0 0.0
    %134 = vmatprep.subr.mxu0 0.0
    %135 = vmatpush1.msra.mxu0 0.0
    %136 = vmatprep.subr.mxu0 0.0
    %137 = vmatpush1.msra.mxu0 0.0
    %138 = vmatprep.subr.mxu0 0.0
    %139 = vmatpush1.msra.mxu0 0.0
    %140 = vmatprep.subr.mxu0 0.0
    %141 = vmatpush1.msra.mxu0 0.0
    %142 = vmatprep.subr.mxu0 0.0
    %143 = vmatpush1.msra.mxu0 0.0
    %144 = vmatprep.subr.mxu0 0.0
    %145 = vmatpush1.msra.mxu0 %v106
    %146 = vmatprep.subr.mxu0 0.0
    %147 = vmatpush2.msra.mxu0 0.0
    %148 = vmatprep.subr.mxu0 0.0
    %149 = vmatpush2.msra.mxu0 0.0
    %150 = vmatprep.subr.mxu0 0.0
    %151 = vmatpush2.msra.mxu0 0.0
    %152 = vmatprep.subr.mxu0 0.0
    %153 = vmatpush2.msra.mxu0 0.0
    %154 = vmatprep.subr.mxu0 0.0
    %155 = vmatpush2.msra.mxu0 0.0
    %156 = vmatprep.subr.mxu0 0.0
    %157 = vmatpush2.msra.mxu0 0.0
    %158 = vmatprep.subr.mxu0 0.0
    %159 = vmatpush2.msra.mxu0 0.0
    %160 = vmatprep.subr.mxu0 0.0
    %161 = vmatpush2.msra.mxu0 0.0
    %162 = vmatprep.subr.mxu0 0.0
    %163 = vmatpush2.msra.mxu0 0.0
    %164 = vmatprep.subr.mxu0 0.0
    %165 = vmatpush2.msra.mxu0 0.0
    %166 = vmatprep.subr.mxu0 0.0
    %167 = vmatpush2.msra.mxu0 0.0
    %168 = vmatprep.subr.mxu0 0.0
    %169 = vmatpush2.msra.mxu0 0.0
    %170 = vmatprep.subr.mxu0 0.0
    %171 = vmatpush2.msra.mxu0 0.0
    %172 = vmatprep.subr.mxu0 0.0
    %173 = vmatpush2.msra.mxu0 0.0
    %174 = vmatprep.subr.mxu0 0.0
    %175 = vmatpush2.msra.mxu0 0.0
    %176 = vmatprep.subr.mxu0 0.0
    %177 = vmatpush2.msra.mxu0 0.0
    %178 = vmatprep.mubr.f32.mxu0 0.0
    %179 = vmatmul.mubr.f32.gmra.mxu0 %v112
    %v180 = vpop.f32.mrf.mxu0
    %v181 = vadd.f32 0.0, %v180
    %v182 = vpop.f32.mrf.mxu0
    %183 = vdwg.mxu0
    %vm184 = vcmp.ge.f32.partialorder %v181, 0.0
    %v185 = vmul.f32 %v181, 0.2
    %v186 = vsel %vm184, %v181, %v185
    %v187 = vld [vmem:[%s3] sm:$0xff]
    %v188 = vld [vmem:[%s3 + $0x8] sm:$0xff]
    %v189 = vld [vmem:[%s3 + $0x10] sm:$0xff]
    %v190 = vld [vmem:[%s3 + $0x18] sm:$0xff]
    %vm191 = vcmask 261120
    %v193 = vsel %vm191, %v186, 0
    %195 = vmatprep.subr.mxu0 0.0
    %196 = vmatpush1.msra.mxu0 0.0
    %197 = vmatprep.subr.mxu0 0.0
    %198 = vmatpush1.msra.mxu0 0.0
    %199 = vmatprep.subr.mxu0 0.0
    %200 = vmatpush1.msra.mxu0 0.0
    %201 = vmatprep.subr.mxu0 0.0
    %202 = vmatpush1.msra.mxu0 0.0
    %203 = vmatprep.subr.mxu0 0.0
    %204 = vmatpush1.msra.mxu0 0.0
    %205 = vmatprep.subr.mxu0 0.0
    %206 = vmatpush1.msra.mxu0 0.0
    %207 = vmatprep.subr.mxu0 0.0
    %208 = vmatpush1.msra.mxu0 0.0
    %209 = vmatprep.subr.mxu0 0.0
    %210 = vmatpush1.msra.mxu0 0.0
    %211 = vmatprep.subr.mxu0 0.0
    %212 = vmatpush1.msra.mxu0 0.0
    %213 = vmatprep.subr.mxu0 0.0
    %214 = vmatpush1.msra.mxu0 0.0
    %215 = vmatprep.subr.mxu0 0.0
    %216 = vmatpush1.msra.mxu0 0.0
    %217 = vmatprep.subr.mxu0 0.0
    %218 = vmatpush1.msra.mxu0 0.0
    %219 = vmatprep.subr.mxu0 0.0
    %220 = vmatpush1.msra.mxu0 %v190
    %221 = vmatprep.subr.mxu0 0.0
    %222 = vmatpush1.msra.mxu0 %v189
    %223 = vmatprep.subr.mxu0 0.0
    %224 = vmatpush1.msra.mxu0 %v188
    %225 = vmatprep.subr.mxu0 0.0
    %226 = vmatpush1.msra.mxu0 %v187
    %227 = vmatprep.subr.mxu0 0.0
    %228 = vmatpush2.msra.mxu0 0.0
    %229 = vmatprep.subr.mxu0 0.0
    %230 = vmatpush2.msra.mxu0 0.0
    %231 = vmatprep.subr.mxu0 0.0
    %232 = vmatpush2.msra.mxu0 0.0
    %233 = vmatprep.subr.mxu0 0.0
    %234 = vmatpush2.msra.mxu0 0.0
    %235 = vmatprep.subr.mxu0 0.0
    %236 = vmatpush2.msra.mxu0 0.0
    %237 = vmatprep.subr.mxu0 0.0
    %238 = vmatpush2.msra.mxu0 0.0
    %239 = vmatprep.subr.mxu0 0.0
    %240 = vmatpush2.msra.mxu0 0.0
    %241 = vmatprep.subr.mxu0 0.0
    %242 = vmatpush2.msra.mxu0 0.0
    %243 = vmatprep.subr.mxu0 0.0
    %244 = vmatpush2.msra.mxu0 0.0
    %245 = vmatprep.subr.mxu0 0.0
    %246 = vmatpush2.msra.mxu0 0.0
    %247 = vmatprep.subr.mxu0 0.0
    %248 = vmatpush2.msra.mxu0 0.0
    %249 = vmatprep.subr.mxu0 0.0
    %250 = vmatpush2.msra.mxu0 0.0
    %251 = vmatprep.subr.mxu0 0.0
    %252 = vmatpush2.msra.mxu0 0.0
    %253 = vmatprep.subr.mxu0 0.0
    %254 = vmatpush2.msra.mxu0 0.0
    %255 = vmatprep.subr.mxu0 0.0
    %256 = vmatpush2.msra.mxu0 0.0
    %257 = vmatprep.subr.mxu0 0.0
    %258 = vmatpush2.msra.mxu0 0.0
    %259 = vmatprep.mubr.f32.mxu0 0.0
    %260 = vmatmul.mubr.f32.gmra.mxu0 %v193
    %v261 = vpop.f32.mrf.mxu0
    %v262 = vadd.f32 0.0, %v261
    %v263 = vpop.f32.mrf.mxu0
    %264 = vdwg.mxu0
    %265 = vmatprep.subr.mxu0 0.0
    %266 = vmatpush1.msra.mxu0 0.0
    %267 = vmatprep.subr.mxu0 0.0
    %268 = vmatpush1.msra.mxu0 0.0
    %269 = vmatprep.subr.mxu0 0.0
    %270 = vmatpush1.msra.mxu0 0.0
    %271 = vmatprep.subr.mxu0 0.0
    %272 = vmatpush1.msra.mxu0 0.0
    %273 = vmatprep.subr.mxu0 0.0
    %274 = vmatpush1.msra.mxu0 0.0
    %275 = vmatprep.subr.mxu0 0.0
    %276 = vmatpush1.msra.mxu0 0.0
    %277 = vmatprep.subr.mxu0 0.0
    %278 = vmatpush1.msra.mxu0 0.0
    %279 = vmatprep.subr.mxu0 0.0
    %280 = vmatpush1.msra.mxu0 0.0
    %281 = vmatprep.subr.mxu0 0.0
    %282 = vmatpush1.msra.mxu0 0.0
    %283 = vmatprep.subr.mxu0 0.0
    %284 = vmatpush1.msra.mxu0 0.0
    %285 = vmatprep.subr.mxu0 0.0
    %286 = vmatpush1.msra.mxu0 0.0
    %287 = vmatprep.subr.mxu0 0.0
    %288 = vmatpush1.msra.mxu0 0.0
    %289 = vmatprep.subr.mxu0 0.0
    %290 = vmatpush1.msra.mxu0 0.0
    %291 = vmatprep.subr.mxu0 0.0
    %292 = vmatpush1.msra.mxu0 0.0
    %293 = vmatprep.subr.mxu0 0.0
    %294 = vmatpush1.msra.mxu0 0.0
    %295 = vmatprep.subr.mxu0 0.0
    %296 = vmatpush1.msra.mxu0 %v262
    %297 = vmatprep.subr.mxu0 0.0
    %298 = vmatpush2.msra.mxu0 0.0
    %299 = vmatprep.subr.mxu0 0.0
    %300 = vmatpush2.msra.mxu0 0.0
    %301 = vmatprep.subr.mxu0 0.0
    %302 = vmatpush2.msra.mxu0 0.0
    %303 = vmatprep.subr.mxu0 0.0
    %304 = vmatpush2.msra.mxu0 0.0
    %305 = vmatprep.subr.mxu0 0.0
    %306 = vmatpush2.msra.mxu0 0.0
    %307 = vmatprep.subr.mxu0 0.0
    %308 = vmatpush2.msra.mxu0 0.0
    %309 = vmatprep.subr.mxu0 0.0
    %310 = vmatpush2.msra.mxu0 0.0
    %311 = vmatprep.subr.mxu0 0.0
    %312 = vmatpush2.msra.mxu0 0.0
    %313 = vmatprep.subr.mxu0 0.0
    %314 = vmatpush2.msra.mxu0 0.0
    %315 = vmatprep.subr.mxu0 0.0
    %316 = vmatpush2.msra.mxu0 0.0
    %317 = vmatprep.subr.mxu0 0.0
    %318 = vmatpush2.msra.mxu0 0.0
    %319 = vmatprep.subr.mxu0 0.0
    %320 = vmatpush2.msra.mxu0 0.0
    %321 = vmatprep.subr.mxu0 0.0
    %322 = vmatpush2.msra.mxu0 0.0
    %323 = vmatprep.subr.mxu0 0.0
    %324 = vmatpush2.msra.mxu0 0.0
    %325 = vmatprep.subr.mxu0 0.0
    %326 = vmatpush2.msra.mxu0 0.0
    %327 = vmatprep.subr.mxu0 0.0
    %328 = vmatpush2.msra.mxu0 0.0
    %329 = vmatprep.mubr.f32.mxu0 0.0
    %330 = vmatmul.mubr.f32.gmra.mxu0 %v112
    %v331 = vpop.f32.mrf.mxu0
    %v332 = vadd.f32 0.0, %v331
    %v333 = vpop.f32.mrf.mxu0
    %334 = vdwg.mxu0
    %v335 = vmul.f32 %v332, %v332
    %v336 = vsel %vm191, %v335, 0.0
    %337 = vadd.xlane.f32.xlu0 %v336
    %v338 = vpop.xlane.xlu0 %337
    %v339 = vmax.f32 %v338, 1e-24
    %v340 = vrsqrt.pop %v339
    %v341 = vmul.f32 %v332, %v340
    %342 = vst.msk [vmem:[%s4] sm:$0xff] %vm191, %v341
    // Predicated region
    $region22: #{cca_forward.2} parent=1 // pred_check
      _
    $region23: #{cca_forward.2} parent=1 // pred_check_branch
      %344 = sbr.rel (0) target = $region25
    $region24: #{cca_forward.2} parent=1 // pred_region
      _
    $region25: #{cca_forward.2} parent=1 // pred_fallthru
      _
    // Predicated region
    $region26: #{cca_forward.2} parent=1 // pred_check
      _
    $region27: #{cca_forward.2} parent=1 // pred_check_branch
      %346 = sbr.rel (0) target = $region29
    $region28: #{cca_forward.2} parent=1 // pred_region
      _
    $region29: #{cca_forward.2} parent=1 // pred_fallthru
      _
    %347 = vsyncpa [#allocation3], 1

// kernel: mul.43
$region0: #{mul.43}
  #allocation0 [shape = 's32[1]{0}', space=sflag, size = 0x4, scoped, tag = 'scoped memory for mul.43']
  %s0 = inlined_call_operand.vmem [shape: f32[2,32], index: 0, kind: input, shape index: {}, may-alias: {0,1}]
  %s1 = inlined_call_operand.vmem [shape: f32[2,32], index: 1, kind: input, shape index: {}, may-alias: {0,1}]
  %s2 = inlined_call_operand.vmem [shape: f32[2,32], index: 2, kind: output, shape index: {}]
  %v3 = vld [vmem:[%s0] sm:$0x3]
  %v4 = vld [vmem:[%s1] sm:$0x3]
  %5 = xla_tuple %v3, %v4
  %6 = xla_tuple %5
  %v7 = vmul.f32 %v3, %v4
  %8 = xla_tuple %v7
  %9 = vst [vmem:[%s2] sm:$0x3] %v7

// kernel: cca_forward.3
$region0: #{cca_forward.3}
  #allocation0 [shape = 'u32[]', space=smem, size = 0x4, offset = 0x4, fixed_abs, tag = 'smem constant byte address 0x4 - core index']
  #allocation1 [shape = 'u32[144,128]{1,0:T(1,128)}', space=vmem, size = 0x12000, scoped, tag = 'internal scratch']
  %s0 = inlined_call_operand.vmem [shape: f32[2,32,16], index: 0, kind: input, shape index: {}]
  %s1 = inlined_call_operand.vmem [shape: f32[16,256], index: 1, kind: input, shape index: {}]
  %s2 = inlined_call_operand.vmem [shape: f32[32,32], index: 2, kind: input, shape index: {}]
  %s3 = inlined_call_operand.vmem [shape: f32[32,1], index: 3, kind: input, shape index: {}]
  %s4 = inlined_call_operand.vmem [shape: f32[2,4,128], index: 4, kind: input, shape index: {}]
  %s5 = inlined_call_operand.vmem [shape: f32[1,256], index: 5, kind: input, shape index: {}]
  %s6 = inlined_call_operand.vmem [shape: f32[2,1,256], index: 6, kind: output, shape index: {}]
  %s7 = sld [smem:[#allocation0]]
  $region95: #{cca_forward.3} parent=0
    _
  %s9 = ssub.s32 1, %s7
  %s10 = scalar_select 0, %s9, %s7
  $region1: #{cca_forward.3} parent=0
    #allocation2 [shape = 'u8[16384]{0}', space=vmem, size = 0x4000, scoped, tag = 'input window, operand 1']
    loop: start=0, step=1, limit=6
    $region2: #{cca_forward.3} parent=1 // loop_pre_header
      _
    $region3: #{cca_forward.3} parent=1 // loop_header
      %s12 = sphi 0, %s16
      %p13 = scmp.ge.s32.totalorder %s12, 6
      %s19 = sphi 0, %s31
      %s20 = sphi 0, %s27
      %s21 = sphi 0, %s19
      %s22 = sphi 0, %s20
      %s23 = sphi 0, %s21
      %s24 = sphi 0, %s22
      %s34 = sphi 0, %s36
      %s37 = sphi 0, %s34
      %s38 = sphi 0, %s37
      %s54 = sphi 0, %s38
      %s60 = sphi 0, %s62
      %s63 = sphi 0, %s60
      %s64 = sphi 0, %s63
      %s80 = sphi 0, %s64
      %s84 = sphi 0, %s84
      %s86 = sphi 0, %s84
      %s87 = sphi 0, %s86
      %s101 = sphi 0, %s87
      %s105 = sphi 0, %s105
      %s107 = sphi 0, %s105
      %s108 = sphi 0, %s107
      %s122 = sphi 0, %s108
      %s128 = sphi 0, %s130
      %s131 = sphi 0, %s128
      %s132 = sphi 0, %s131
      %s148 = sphi 0, %s132
      %s154 = sphi 0, %s156
      %s157 = sphi 0, %s154
      %s158 = sphi 0, %s157
      %s174 = sphi 0, %s158
      %s182 = sphi 0, %s184
      %s185 = sphi 0, %s182
      %s186 = sphi 0, %s185
      %s202 = sphi 0, %s186
    $region4: #{cca_forward.3} parent=1 // loop_header_branch
      %15 = sbr.rel (%p13) target = $region8
    $region5: #{cca_forward.3} parent=1 // loop_body
      %s17 = ssub.s32 %s12, 1
      %s18 = ssub.s32 %s12, 2
      %s25 = sadd.s32 1, %s20
      %p26 = scmp.ge.s32.totalorder %s25, 2
      %s27 = scalar_select %p26, 0, %s25
      %s28 = sadd.s32 1, %s19
      %s29 = scalar_select %p26, %s28, %s19
      %p30 = scmp.ge.s32.totalorder %s29, 2
      %s31 = scalar_select %p30, 0, %s29
      %s32 = ssub.s32 %s19, %s31
      %p33 = scmp.eq.s32.totalorder %s32, 0
      %s35 = sadd.s32 %s34, 1
      %s36 = scalar_select %p33, %s34, %s35
      %p39 = pneg %p33
      %p40 = scmp.eq.s32.totalorder %s12, 3
      %p41 = por %p39, %p40
      %p42 = scmp.ne.s32.totalorder %s34, %s37
      %p43 = scmp.eq.s32.totalorder %s12, 0
      %p44 = por %p42, %p43
      %p45 = scmp.ne.s32.totalorder %s34, %s37
      %p46 = scmp.eq.s32.totalorder %s17, 3
      %p47 = por %p45, %p46
      %p48 = scmp.ne.s32.totalorder %s37, %s38
      %p49 = scmp.eq.s32.totalorder %s17, 0
      %p50 = por %p48, %p49
      %p51 = scmp.ne.s32.totalorder %s37, %s38
      %p52 = scmp.eq.s32.totalorder %s18, 3
      %p53 = por %p51, %p52
      %p55 = scmp.ne.s32.totalorder %s38, %s54
      %p56 = scmp.eq.s32.totalorder %s18, 0
      %p57 = por %p55, %p56
      %s58 = ssub.s32 %s20, %s27
      %p59 = scmp.eq.s32.totalorder %s58, 0
      %s61 = sadd.s32 %s60, 1
      %s62 = scalar_select %p59, %s60, %s61
      %p65 = pneg %p59
      %p66 = scmp.eq.s32.totalorder %s12, 3
      %p67 = por %p65, %p66
      %p68 = scmp.ne.s32.totalorder %s60, %s63
      %p69 = scmp.eq.s32.totalorder %s12, 0
      %p70 = por %p68, %p69
      %p71 = scmp.ne.s32.totalorder %s60, %s63
      %p72 = scmp.eq.s32.totalorder %s17, 3
      %p73 = por %p71, %p72
      %p74 = scmp.ne.s32.totalorder %s63, %s64
      %p75 = scmp.eq.s32.totalorder %s17, 0
      %p76 = por %p74, %p75
      %p77 = scmp.ne.s32.totalorder %s63, %s64
      %p78 = scmp.eq.s32.totalorder %s18, 3
      %p79 = por %p77, %p78
      %p81 = scmp.ne.s32.totalorder %s64, %s80
      %p82 = scmp.eq.s32.totalorder %s18, 0
      %p83 = por %p81, %p82
      %s85 = sadd.s32 %s84, 1
      %p88 = scmp.eq.s32.totalorder %s12, 3
      %p89 = scmp.ne.s32.totalorder %s84, %s86
      %p90 = scmp.eq.s32.totalorder %s12, 0
      %p91 = por %p89, %p90
      %p92 = scmp.ne.s32.totalorder %s84, %s86
      %p93 = scmp.eq.s32.totalorder %s17, 3
      %p94 = por %p92, %p93
      %p95 = scmp.ne.s32.totalorder %s86, %s87
      %p96 = scmp.eq.s32.totalorder %s17, 0
      %p97 = por %p95, %p96
      %p98 = scmp.ne.s32.totalorder %s86, %s87
      %p99 = scmp.eq.s32.totalorder %s18, 3
      %p100 = por %p98, %p99
      %p102 = scmp.ne.s32.totalorder %s87, %s101
      %p103 = scmp.eq.s32.totalorder %s18, 0
      %p104 = por %p102, %p103
      %s106 = sadd.s32 %s105, 1
      %p109 = scmp.eq.s32.totalorder %s12, 3
      %p110 = scmp.ne.s32.totalorder %s105, %s107
      %p111 = scmp.eq.s32.totalorder %s12, 0
      %p112 = por %p110, %p111
      %p113 = scmp.ne.s32.totalorder %s105, %s107
      %p114 = scmp.eq.s32.totalorder %s17, 3
      %p115 = por %p113, %p114
      %p116 = scmp.ne.s32.totalorder %s107, %s108
      %p117 = scmp.eq.s32.totalorder %s17, 0
      %p118 = por %p116, %p117
      %p119 = scmp.ne.s32.totalorder %s107, %s108
      %p120 = scmp.eq.s32.totalorder %s18, 3
      %p121 = por %p119, %p120
      %p123 = scmp.ne.s32.totalorder %s108, %s122
      %p124 = scmp.eq.s32.totalorder %s18, 0
      %p125 = por %p123, %p124
      %s126 = ssub.s32 %s19, %s31
      %p127 = scmp.eq.s32.totalorder %s126, 0
      %s129 = sadd.s32 %s128, 1
      %s130 = scalar_select %p127, %s128, %s129
      %p133 = pneg %p127
      %p134 = scmp.eq.s32.totalorder %s12, 3
      %p135 = por %p133, %p134
      %p136 = scmp.ne.s32.totalorder %s128, %s131
      %p137 = scmp.eq.s32.totalorder %s12, 0
      %p138 = por %p136, %p137
      %p139 = scmp.ne.s32.totalorder %s128, %s131
      %p140 = scmp.eq.s32.totalorder %s17, 3
      %p141 = por %p139, %p140
      %p142 = scmp.ne.s32.totalorder %s131, %s132
      %p143 = scmp.eq.s32.totalorder %s17, 0
      %p144 = por %p142, %p143
      %p145 = scmp.ne.s32.totalorder %s131, %s132
      %p146 = scmp.eq.s32.totalorder %s18, 3
      %p147 = por %p145, %p146
      %p149 = scmp.ne.s32.totalorder %s132, %s148
      %p150 = scmp.eq.s32.totalorder %s18, 0
      %p151 = por %p149, %p150
      %s152 = ssub.s32 %s20, %s27
      %p153 = scmp.eq.s32.totalorder %s152, 0
      %s155 = sadd.s32 %s154, 1
      %s156 = scalar_select %p153, %s154, %s155
      %p159 = pneg %p153
      %p160 = scmp.eq.s32.totalorder %s12, 3
      %p161 = por %p159, %p160
      %p162 = scmp.ne.s32.totalorder %s154, %s157
      %p163 = scmp.eq.s32.totalorder %s12, 0
      %p164 = por %p162, %p163
      %p165 = scmp.ne.s32.totalorder %s154, %s157
      %p166 = scmp.eq.s32.totalorder %s17, 3
      %p167 = por %p165, %p166
      %p168 = scmp.ne.s32.totalorder %s157, %s158
      %p169 = scmp.eq.s32.totalorder %s17, 0
      %p170 = por %p168, %p169
      %p171 = scmp.ne.s32.totalorder %s157, %s158
      %p172 = scmp.eq.s32.totalorder %s18, 3
      %p173 = por %p171, %p172
      %p175 = scmp.ne.s32.totalorder %s158, %s174
      %p176 = scmp.eq.s32.totalorder %s18, 0
      %p177 = por %p175, %p176
      %s178 = ssub.s32 %s19, %s31
      %s179 = ssub.s32 %s20, %s27
      %s180 = sor.u32 %s178, %s179
      %p181 = scmp.eq.s32.totalorder %s180, 0
      %s183 = sadd.s32 %s182, 1
      %s184 = scalar_select %p181, %s182, %s183
      %p187 = pneg %p181
      %p188 = scmp.eq.s32.totalorder %s12, 3
      %p189 = por %p187, %p188
      %p190 = scmp.ne.s32.totalorder %s182, %s185
      %p191 = scmp.eq.s32.totalorder %s12, 0
      %p192 = por %p190, %p191
      %p193 = scmp.ne.s32.totalorder %s182, %s185
      %p194 = scmp.eq.s32.totalorder %s17, 3
      %p195 = por %p193, %p194
      %p196 = scmp.ne.s32.totalorder %s185, %s186
      %p197 = scmp.eq.s32.totalorder %s17, 0
      %p198 = por %p196, %p197
      %p199 = scmp.ne.s32.totalorder %s185, %s186
      %p200 = scmp.eq.s32.totalorder %s18, 3
      %p201 = por %p199, %p200
      %p203 = scmp.ne.s32.totalorder %s186, %s202
      %p204 = scmp.eq.s32.totalorder %s18, 0
      %p205 = por %p203, %p204
      %p206 = scmp.le.s32.totalorder 1, %s12
      %p207 = scmp.lt.s32.totalorder %s12, 5
      %p208 = pnand %p206, %p207
      %p209 = pneg %p208
      // Predicated region
      $region9: #{cca_forward.3} parent=5 // pred_check
        _
      $region10: #{cca_forward.3} parent=5 // pred_check_branch
        %211 = sbr.rel (%p208) target = $region12
      $region11: #{cca_forward.3} parent=5 // pred_region
        %s212 = ssub.s32 %s12, 1
        // Predicated region
        $region13: #{cca_forward.3} parent=11 // pred_check
          %p213 = pneg %p97
        $region14: #{cca_forward.3} parent=11 // pred_check_branch
          %215 = sbr.rel (%p213) target = $region16
        $region15: #{cca_forward.3} parent=11 // pred_region
          _
        $region16: #{cca_forward.3} parent=11 // pred_fallthru
          _
        // Predicated region
        $region17: #{cca_forward.3} parent=11 // pred_check
          %p216 = pneg %p118
        $region18: #{cca_forward.3} parent=11 // pred_check_branch
          %218 = sbr.rel (%p216) target = $region20
        $region19: #{cca_forward.3} parent=11 // pred_region
          _
        $region20: #{cca_forward.3} parent=11 // pred_fallthru
          _
      $region12: #{cca_forward.3} parent=5 // pred_fallthru
        _
      %p219 = scmp.lt.s32.totalorder %s12, 4
      // Predicated region
      $region21: #{cca_forward.3} parent=5 // pred_check
        %p220 = pneg %p219
      $region22: #{cca_forward.3} parent=5 // pred_check_branch
        %222 = sbr.rel (%p220) target = $region24
      $region23: #{cca_forward.3} parent=5 // pred_region
        // Predicated region
        $region25: #{cca_forward.3} parent=23 // pred_check
          %p223 = pneg %p44
        $region26: #{cca_forward.3} parent=23 // pred_check_branch
          %225 = sbr.rel (%p223) target = $region28
        $region27: #{cca_forward.3} parent=23 // pred_region
          %p226 = scmp.lt.s32.totalorder %s19, 1
          %s227 = scalar_select %p226, %s19, 1
          %s228 = smul.addr %s227, 4
          %s229 = smul.addr %s228, 8
          %s230 = scalar_lea.vmem %s0, %s229
        $region28: #{cca_forward.3} parent=23 // pred_fallthru
          _
        // Predicated region
        $region29: #{cca_forward.3} parent=23 // pred_check
          %p231 = pneg %p70
        $region30: #{cca_forward.3} parent=23 // pred_check_branch
          %233 = sbr.rel (%p231) target = $region32
        $region31: #{cca_forward.3} parent=23 // pred_region
          %s234 = sand.u32 %s60, 1
          %s235 = sand.u32 %s60, 1
          %s236 = smul.addr %s235, 16
          %s237 = scalar_lea.vmem [#allocation2], %s236
          %s238 = smul.addr %s20, 8
          %s239 = scalar_lea.vmem %s1, %s238
          // Predicated region
          $region33: #{cca_forward.3} parent=31 // pred_check
            _
          $region34: #{cca_forward.3} parent=31 // pred_check_branch
            %241 = sbr.rel (0) target = $region36
          $region35: #{cca_forward.3} parent=31 // pred_region
            // Predicated region
            $region37: #{cca_forward.3} parent=35 // pred_check
              _
            $region38: #{cca_forward.3} parent=35 // pred_check_branch
              %243 = sbr.rel (0) target = $region40
            $region39: #{cca_forward.3} parent=35 // pred_region
              // Predicated region
              $region52: #{cca_forward.3} parent=39 // pred_check
                _
              $region53: #{cca_forward.3} parent=39 // pred_check_branch
                %261 = sbr.rel (0) target = $region55
              $region54: #{cca_forward.3} parent=39 // pred_region
                loop: start=0, step=1, limit=1
                $region56: #{cca_forward.3} parent=54 // loop_pre_header
                  _
                $region57: #{cca_forward.3} parent=54 // loop_header
                  %s263 = sphi 0, %s267
                  %p264 = scmp.ge.s32.totalorder %s263, 1
                  %s268 = sphi %s239, %s239
                  %s269 = sphi %s237, %s237
                $region58: #{cca_forward.3} parent=54 // loop_header_branch
                  %266 = sbr.rel (%p264) target = $region62
                $region59: #{cca_forward.3} parent=54 // loop_body
                  %v270 = vld [vmem:[%s268] sm:$0xff]
                  %271 = vst [vmem:[%s269] sm:$0xff] %v270
                  %v272 = vld [vmem:[%s268 + $0x10] sm:$0xff]
                  %273 = vst [vmem:[%s269 + $0x8] sm:$0xff] %v272
                $region60: #{cca_forward.3} parent=54 // loop_footer
                  %s267 = sadd.s32 1, %s263
                $region61: #{cca_forward.3} parent=54 // loop_footer_branch
                  %262 = sbr.rel target = $region57
                $region62: #{cca_forward.3} parent=54 // loop_exit
                  _
              $region55: #{cca_forward.3} parent=39 // pred_fallthru
                _
              // Predicated region
              $region63: #{cca_forward.3} parent=39 // pred_check
                _
              $region64: #{cca_forward.3} parent=39 // pred_check_branch
                %275 = sbr.rel target = $region66
              $region65: #{cca_forward.3} parent=39 // pred_region
                _
              $region66: #{cca_forward.3} parent=39 // pred_fallthru
                _
            $region40: #{cca_forward.3} parent=35 // pred_fallthru
              _
            // Predicated region
            $region41: #{cca_forward.3} parent=35 // pred_check
              _
            $region42: #{cca_forward.3} parent=35 // pred_check_branch
              %245 = sbr.rel target = $region44
            $region43: #{cca_forward.3} parent=35 // pred_region
              %s247 = ssub.s32 256, 1
              loop: start=0, step=1, limit=1
              $region45: #{cca_forward.3} parent=43 // loop_pre_header
                _
              $region46: #{cca_forward.3} parent=43 // loop_header
                %s249 = sphi 0, %s253
                %p250 = scmp.ge.s32.totalorder %s249, 1
                %s254 = sphi %s239, %s239
                %s255 = sphi %s237, %s237
              $region47: #{cca_forward.3} parent=43 // loop_header_branch
                %252 = sbr.rel (%p250) target = $region51
              $region48: #{cca_forward.3} parent=43 // loop_body
                %v256 = vld [vmem:[%s254] sm:%s247]
                %257 = vst [vmem:[%s255] sm:%s247] %v256
                %v258 = vld [vmem:[%s254 + $0x10] sm:%s247]
                %259 = vst [vmem:[%s255 + $0x8] sm:%s247] %v258
              $region49: #{cca_forward.3} parent=43 // loop_footer
                %s253 = sadd.s32 1, %s249
              $region50: #{cca_forward.3} parent=43 // loop_footer_branch
                %248 = sbr.rel target = $region46
              $region51: #{cca_forward.3} parent=43 // loop_exit
                _
            $region44: #{cca_forward.3} parent=35 // pred_fallthru
              _
          $region36: #{cca_forward.3} parent=31 // pred_fallthru
            _
          %276 = vnop
        $region32: #{cca_forward.3} parent=23 // pred_fallthru
          _
        // Predicated region
        $region67: #{cca_forward.3} parent=23 // pred_check
          %p277 = pneg %p138
        $region68: #{cca_forward.3} parent=23 // pred_check_branch
          %279 = sbr.rel (%p277) target = $region70
        $region69: #{cca_forward.3} parent=23 // pred_region
          %p280 = scmp.lt.s32.totalorder %s19, 1
          %s281 = scalar_select %p280, %s19, 1
          %s282 = smul.addr %s281, 4
          %s283 = scalar_lea.vmem %s4, %s282
        $region70: #{cca_forward.3} parent=23 // pred_fallthru
          _
        // Predicated region
        $region71: #{cca_forward.3} parent=23 // pred_check
          %p284 = pneg %p164
        $region72: #{cca_forward.3} parent=23 // pred_check_branch
          %286 = sbr.rel (%p284) target = $region74
        $region73: #{cca_forward.3} parent=23 // pred_region
          %p287 = scmp.lt.s32.totalorder %s20, 1
          %s288 = scalar_select %p287, %s20, 1
          %s289 = scalar_lea.vmem %s5, %s288
        $region74: #{cca_forward.3} parent=23 // pred_fallthru
          _
      $region24: #{cca_forward.3} parent=5 // pred_fallthru
        _
      %p290 = scmp.le.s32.totalorder 1, %s12
      %p291 = scmp.lt.s32.totalorder %s12, 5
      %p292 = pnand %p290, %p291
      %p293 = pneg %p292
      // Predicated region
      $region75: #{cca_forward.3} parent=5 // pred_check
        _
      $region76: #{cca_forward.3} parent=5 // pred_check_branch
        %295 = sbr.rel (%p292) target = $region78
      $region77: #{cca_forward.3} parent=5 // pred_region
        %s296 = ssub.s32 %s12, 1
        %s297 = sand.u32 %s63, 1
        %s298 = sand.u32 %s63, 1
        %s299 = smul.addr %s298, 16
        %s300 = scalar_lea.vmem [#allocation2], %s299
        // Predicated region
        $region79: #{cca_forward.3} parent=77 // pred_check
          %p301 = pneg %p76
        $region80: #{cca_forward.3} parent=77 // pred_check_branch
          %303 = sbr.rel (%p301) target = $region82
        $region81: #{cca_forward.3} parent=77 // pred_region
          _
        $region82: #{cca_forward.3} parent=77 // pred_fallthru
          _
        %p304 = scmp.lt.s32.totalorder %s21, 1
        %s305 = scalar_select %p304, %s21, 1
        %s306 = smul.addr %s305, 4
        %s307 = smul.addr %s306, 8
        %s308 = scalar_lea.vmem %s0, %s307
        %p309 = pneg %p50
        %p310 = pneg %p47
        %s311 = sand.u32 %s63, 1
        %s312 = sand.u32 %s63, 1
        %s313 = smul.addr %s312, 16
        %s314 = scalar_lea.vmem [#allocation2], %s313
        %p315 = pneg %p76
        %p316 = pneg %p73
        %p317 = pneg %p97
        %p318 = pneg %p94
        %p319 = pneg %p118
        %p320 = pneg %p115
        %p321 = scmp.lt.s32.totalorder %s21, 1
        %s322 = scalar_select %p321, %s21, 1
        %s323 = smul.addr %s322, 4
        %s324 = scalar_lea.vmem %s4, %s323
        %p325 = pneg %p144
        %p326 = pneg %p141
        %p327 = scmp.lt.s32.totalorder %s22, 1
        %s328 = scalar_select %p327, %s22, 1
        %s329 = scalar_lea.vmem %s5, %s328
        %p330 = pneg %p170
        %p331 = pneg %p167
        %p332 = pneg %p198
        %p333 = pneg %p195
        %p334 = scmp.lt.s32.totalorder %s21, 1
        %s335 = scalar_select %p334, %s21, 1
        %p336 = scmp.lt.s32.totalorder %s22, 1
        %s337 = scalar_select %p336, %s22, 1
        %s338 = smul.addr %s335, 2
        %s339 = sadd.s32 %s337, %s338
        %s340 = scalar_lea.vmem %s6, %s339
        %p341 = scmp.lt.s32.totalorder %s21, 1
        %s342 = scalar_select %p341, %s21, 1
        %s343 = smul.addr %s342, 4
        %s344 = smul.addr %s343, 8
        %s345 = scalar_lea.vmem %s0, %s344
        %p346 = scmp.lt.s32.totalorder %s21, 1
        %s347 = scalar_select %p346, %s21, 1
        %s348 = smul.addr %s347, 4
        %s349 = scalar_lea.vmem %s4, %s348
        %p350 = scmp.lt.s32.totalorder %s22, 1
        %s351 = scalar_select %p350, %s22, 1
        %s352 = scalar_lea.vmem %s5, %s351
        %p353 = scmp.lt.s32.totalorder %s21, 1
        %s354 = scalar_select %p353, %s21, 1
        %p355 = scmp.lt.s32.totalorder %s22, 1
        %s356 = scalar_select %p355, %s22, 1
        %s357 = smul.addr %s354, 2
        %s358 = sadd.s32 %s356, %s357
        %s359 = scalar_lea.vmem %s6, %s358
        %v360 = vld [vmem:[%s345] sm:$0xff]
        %v361 = vld [vmem:[%s345 + $0x8] sm:$0xff]
        %v362 = vld [vmem:[%s345 + $0x10] sm:$0xff]
        %v363 = vld [vmem:[%s345 + $0x18] sm:$0xff]
        %v364 = vld [vmem:[%s300] sm:$0xff]
        %v365 = vld [vmem:[%s300 + $0x8] sm:$0xff]
        %vm366 = vcmask 130048
        %v368 = vsel %vm366, %v360, 0
        %v371 = vsel %vm366, %v361, 0
        %v374 = vsel %vm366, %v362, 0
        %v377 = vsel %vm366, %v363, 0
        %379 = vmatprep.subr.mxu0 0.0
        %380 = vmatpush1.msra.mxu0 0.0
        %381 = vmatprep.subr.mxu0 0.0
        %382 = vmatpush1.msra.mxu0 0.0
        %383 = vmatprep.subr.mxu0 0.0
        %384 = vmatpush1.msra.mxu0 0.0
        %385 = vmatprep.subr.mxu0 0.0
        %386 = vmatpush1.msra.mxu0 0.0
        %387 = vmatprep.subr.mxu0 0.0
        %388 = vmatpush1.msra.mxu0 0.0
        %389 = vmatprep.subr.mxu0 0.0
        %390 = vmatpush1.msra.mxu0 0.0
        %391 = vmatprep.subr.mxu0 0.0
        %392 = vmatpush1.msra.mxu0 0.0
        %393 = vmatprep.subr.mxu0 0.0
        %394 = vmatpush1.msra.mxu0 0.0
        %395 = vmatprep.subr.mxu0 0.0
        %396 = vmatpush1.msra.mxu0 0.0
        %397 = vmatprep.subr.mxu0 0.0
        %398 = vmatpush1.msra.mxu0 0.0
        %399 = vmatprep.subr.mxu0 0.0
        %400 = vmatpush1.msra.mxu0 0.0
        %401 = vmatprep.subr.mxu0 0.0
        %402 = vmatpush1.msra.mxu0 0.0
        %403 = vmatprep.subr.mxu0 0.0
        %404 = vmatpush1.msra.mxu0 0.0
        %405 = vmatprep.subr.mxu0 0.0
        %406 = vmatpush1.msra.mxu0 0.0
        %407 = vmatprep.subr.mxu0 0.0
        %408 = vmatpush1.msra.mxu0 %v365
        %409 = vmatprep.subr.mxu0 0.0
        %410 = vmatpush1.msra.mxu0 %v364
        %411 = vmatprep.subr.mxu0 0.0
        %412 = vmatpush2.msra.mxu0 0.0
        %413 = vmatprep.subr.mxu0 0.0
        %414 = vmatpush2.msra.mxu0 0.0
        %415 = vmatprep.subr.mxu0 0.0
        %416 = vmatpush2.msra.mxu0 0.0
        %417 = vmatprep.subr.mxu0 0.0
        %418 = vmatpush2.msra.mxu0 0.0
        %419 = vmatprep.subr.mxu0 0.0
        %420 = vmatpush2.msra.mxu0 0.0
        %421 = vmatprep.subr.mxu0 0.0
        %422 = vmatpush2.msra.mxu0 0.0
        %423 = vmatprep.subr.mxu0 0.0
        %424 = vmatpush2.msra.mxu0 0.0
        %425 = vmatprep.subr.mxu0 0.0
        %426 = vmatpush2.msra.mxu0 0.0
        %427 = vmatprep.subr.mxu0 0.0
        %428 = vmatpush2.msra.mxu0 0.0
        %429 = vmatprep.subr.mxu0 0.0
        %430 = vmatpush2.msra.mxu0 0.0
        %431 = vmatprep.subr.mxu0 0.0
        %432 = vmatpush2.msra.mxu0 0.0
        %433 = vmatprep.subr.mxu0 0.0
        %434 = vmatpush2.msra.mxu0 0.0
        %435 = vmatprep.subr.mxu0 0.0
        %436 = vmatpush2.msra.mxu0 0.0
        %437 = vmatprep.subr.mxu0 0.0
        %438 = vmatpush2.msra.mxu0 0.0
        %439 = vmatprep.subr.mxu0 0.0
        %440 = vmatpush2.msra.mxu0 0.0
        %441 = vmatprep.subr.mxu0 0.0
        %442 = vmatpush2.msra.mxu0 0.0
        %443 = vmatprep.mubr.f32.mxu0 0.0
        %444 = vmatmul.mubr.f32.gmra.mxu0 %v368
        %v445 = vpop.f32.mrf.mxu0
        %v446 = vadd.f32 0.0, %v445
        %v447 = vpop.f32.mrf.mxu0
        %448 = vmatprep.mubr.f32.mxu0 0.0
        %449 = vmatmul.mubr.f32.gmra.mxu0 %v371
        %v450 = vpop.f32.mrf.mxu0
        %v451 = vadd.f32 0.0, %v450
        %v452 = vpop.f32.mrf.mxu0
        %453 = vmatprep.mubr.f32.mxu0 0.0
        %454 = vmatmul.mubr.f32.gmra.mxu0 %v374
        %v455 = vpop.f32.mrf.mxu0
        %v456 = vadd.f32 0.0, %v455
        %v457 = vpop.f32.mrf.mxu0
        %458 = vmatprep.mubr.f32.mxu0 0.0
        %459 = vmatmul.mubr.f32.gmra.mxu0 %v377
        %v460 = vpop.f32.mrf.mxu0
        %v461 = vadd.f32 0.0, %v460
        %v462 = vpop.f32.mrf.mxu0
        %463 = vdwg.mxu0
        %v464 = vld [vmem:[%s2] sm:$0xff]
        %v465 = vld [vmem:[%s2 + $0x8] sm:$0xff]
        %v466 = vld [vmem:[%s2 + $0x10] sm:$0xff]
        %v467 = vld [vmem:[%s2 + $0x18] sm:$0xff]
        %v468 = vld [vmem:[%s3] sm:$0xff]
        %v469 = vld [vmem:[%s3 + $0x8] sm:$0xff]
        %v470 = vld [vmem:[%s3 + $0x10] sm:$0xff]
        %v471 = vld [vmem:[%s3 + $0x18] sm:$0xff]
        %473 = vset.pattern.permute.xlu0 0
        %474 = vperm.xlu0 %473, %v468
        %v475 = vpop.permute.xlu0 %474
        %478 = vset.pattern.permute.xlu0 0
        %479 = vperm.xlu0 %478, %v469
        %v480 = vpop.permute.xlu0 %479
        %483 = vset.pattern.permute.xlu0 0
        %484 = vperm.xlu0 %483, %v470
        %v485 = vpop.permute.xlu0 %484
        %488 = vset.pattern.permute.xlu0 0
        %489 = vperm.xlu0 %488, %v471
        %v490 = vpop.permute.xlu0 %489
        %vm492 = vcmask 261120
        %v494 = vsel %vm492, %v464, 0
        %v497 = vsel %vm492, %v465, 0
        %v500 = vsel %vm492, %v466, 0
        %v503 = vsel %vm492, %v467, 0
        %505 = vmatprep.subr.mxu0 0.0
        %506 = vmatpush1.msra.mxu0 0.0
        %507 = vmatprep.subr.mxu0 0.0
        %508 = vmatpush1.msra.mxu0 0.0
        %509 = vmatprep.subr.mxu0 0.0
        %510 = vmatpush1.msra.mxu0 0.0
        %511 = vmatprep.subr.mxu0 0.0
        %512 = vmatpush1.msra.mxu0 0.0
        %513 = vmatprep.subr.mxu0 0.0
        %514 = vmatpush1.msra.mxu0 0.0
        %515 = vmatprep.subr.mxu0 0.0
        %516 = vmatpush1.msra.mxu0 0.0
        %517 = vmatprep.subr.mxu0 0.0
        %518 = vmatpush1.msra.mxu0 0.0
        %519 = vmatprep.subr.mxu0 0.0
        %520 = vmatpush1.msra.mxu0 0.0
        %521 = vmatprep.subr.mxu0 0.0
        %522 = vmatpush1.msra.mxu0 0.0
        %523 = vmatprep.subr.mxu0 0.0
        %524 = vmatpush1.msra.mxu0 0.0
        %525 = vmatprep.subr.mxu0 0.0
        %526 = vmatpush1.msra.mxu0 0.0
        %527 = vmatprep.subr.mxu0 0.0
        %528 = vmatpush1.msra.mxu0 0.0
        %529 = vmatprep.subr.mxu0 0.0
        %530 = vmatpush1.msra.mxu0 %v461
        %531 = vmatprep.subr.mxu0 0.0
        %532 = vmatpush1.msra.mxu0 %v456
        %533 = vmatprep.subr.mxu0 0.0
        %534 = vmatpush1.msra.mxu0 %v451
        %535 = vmatprep.subr.mxu0 0.0
        %536 = vmatpush1.msra.mxu0 %v446
        %537 = vmatprep.subr.mxu0 0.0
        %538 = vmatpush2.msra.mxu0 0.0
        %539 = vmatprep.subr.mxu0 0.0
        %540 = vmatpush2.msra.mxu0 0.0
        %541 = vmatprep.subr.mxu0 0.0
        %542 = vmatpush2.msra.mxu0 0.0
        %543 = vmatprep.subr.mxu0 0.0
        %544 = vmatpush2.msra.mxu0 0.0
        %545 = vmatprep.subr.mxu0 0.0
        %546 = vmatpush2.msra.mxu0 0.0
        %547 = vmatprep.subr.mxu0 0.0
        %548 = vmatpush2.msra.mxu0 0.0
        %549 = vmatprep.subr.mxu0 0.0
        %550 = vmatpush2.msra.mxu0 0.0
        %551 = vmatprep.subr.mxu0 0.0
        %552 = vmatpush2.msra.mxu0 0.0
        %553 = vmatprep.subr.mxu0 0.0
        %554 = vmatpush2.msra.mxu0 0.0
        %555 = vmatprep.subr.mxu0 0.0
        %556 = vmatpush2.msra.mxu0 0.0
        %557 = vmatprep.subr.mxu0 0.0
        %558 = vmatpush2.msra.mxu0 0.0
        %559 = vmatprep.subr.mxu0 0.0
        %560 = vmatpush2.msra.mxu0 0.0
        %561 = vmatprep.subr.mxu0 0.0
        %562 = vmatpush2.msra.mxu0 0.0
        %563 = vmatprep.subr.mxu0 0.0
        %564 = vmatpush2.msra.mxu0 0.0
        %565 = vmatprep.subr.mxu0 0.0
        %566 = vmatpush2.msra.mxu0 0.0
        %567 = vmatprep.subr.mxu0 0.0
        %568 = vmatpush2.msra.mxu0 0.0
        %569 = vmatprep.mubr.f32.mxu0 0.0
        %570 = vmatmul.mubr.f32.gmra.mxu0 %v494
        %v571 = vpop.f32.mrf.mxu0
        %v572 = vadd.f32 %v475, %v571
        %v573 = vpop.f32.mrf.mxu0
        %574 = vmatprep.mubr.f32.mxu0 0.0
        %575 = vmatmul.mubr.f32.gmra.mxu0 %v497
        %v576 = vpop.f32.mrf.mxu0
        %v577 = vadd.f32 %v480, %v576
        %v578 = vpop.f32.mrf.mxu0
        %579 = vmatprep.mubr.f32.mxu0 0.0
        %580 = vmatmul.mubr.f32.gmra.mxu0 %v500
        %v581 = vpop.f32.mrf.mxu0
        %v582 = vadd.f32 %v485, %v581
        %v583 = vpop.f32.mrf.mxu0
        %584 = vmatprep.mubr.f32.mxu0 0.0
        %585 = vmatmul.mubr.f32.gmra.mxu0 %v503
        %v586 = vpop.f32.mrf.mxu0
        %v587 = vadd.f32 %v490, %v586
        %v588 = vpop.f32.mrf.mxu0
        %589 = vdwg.mxu0
        %v590 = vmax.f32 %v572, 0.0
        %v591 = vmax.f32 %v577, 0.0
        %v592 = vmax.f32 %v582, 0.0
        %v593 = vmax.f32 %v587, 0.0
        %v594 = vmul.f32 %v590, %v590
        %v595 = vmul.f32 %v591, %v591
        %v596 = vmul.f32 %v592, %v592
        %v597 = vmul.f32 %v593, %v593
        %v598 = vmul.f32 %v446, %v446
        %v599 = vmul.f32 %v451, %v451
        %v600 = vmul.f32 %v456, %v456
        %v601 = vmul.f32 %v461, %v461
        %v602 = vld [vmem:[%s349] sm:$0xf]
        %603 = vmatprep.subr.mxu0 0.0
        %604 = vmatpush1.msra.mxu0 %v601
        %605 = vmatprep.subr.mxu0 0.0
        %606 = vmatpush1.msra.mxu0 %v600
        %607 = vmatprep.subr.mxu0 0.0
        %608 = vmatpush1.msra.mxu0 %v599
        %609 = vmatprep.subr.mxu0 0.0
        %610 = vmatpush1.msra.mxu0 %v598
        %611 = vmatprep.subr.mxu0 0.0
        %612 = vmatpush1.msra.mxu0 %v461
        %613 = vmatprep.subr.mxu0 0.0
        %614 = vmatpush1.msra.mxu0 %v456
        %615 = vmatprep.subr.mxu0 0.0
        %616 = vmatpush1.msra.mxu0 %v451
        %617 = vmatprep.subr.mxu0 0.0
        %618 = vmatpush1.msra.mxu0 %v446
        %619 = vmatprep.subr.mxu0 0.0
        %620 = vmatpush1.msra.mxu0 %v597
        %621 = vmatprep.subr.mxu0 0.0
        %622 = vmatpush1.msra.mxu0 %v596
        %623 = vmatprep.subr.mxu0 0.0
        %624 = vmatpush1.msra.mxu0 %v595
        %625 = vmatprep.subr.mxu0 0.0
        %626 = vmatpush1.msra.mxu0 %v594
        %627 = vmatprep.subr.mxu0 0.0
        %628 = vmatpush1.msra.mxu0 %v593
        %629 = vmatprep.subr.mxu0 0.0
        %630 = vmatpush1.msra.mxu0 %v592
        %631 = vmatprep.subr.mxu0 0.0
        %632 = vmatpush1.msra.mxu0 %v591
        %633 = vmatprep.subr.mxu0 0.0
        %634 = vmatpush1.msra.mxu0 %v590
        %635 = vmatprep.subr.mxu0 0.0
        %636 = vmatpush2.msra.mxu0 0.0
        %637 = vmatprep.subr.mxu0 0.0
        %638 = vmatpush2.msra.mxu0 0.0
        %639 = vmatprep.subr.mxu0 0.0
        %640 = vmatpush2.msra.mxu0 0.0
        %641 = vmatprep.subr.mxu0 0.0
        %642 = vmatpush2.msra.mxu0 0.0
        %643 = vmatprep.subr.mxu0 0.0
        %644 = vmatpush2.msra.mxu0 0.0
        %645 = vmatprep.subr.mxu0 0.0
        %646 = vmatpush2.msra.mxu0 0.0
        %647 = vmatprep.subr.mxu0 0.0
        %648 = vmatpush2.msra.mxu0 0.0
        %649 = vmatprep.subr.mxu0 0.0
        %650 = vmatpush2.msra.mxu0 0.0
        %651 = vmatprep.subr.mxu0 0.0
        %652 = vmatpush2.msra.mxu0 0.0
        %653 = vmatprep.subr.mxu0 0.0
        %654 = vmatpush2.msra.mxu0 0.0
        %655 = vmatprep.subr.mxu0 0.0
        %656 = vmatpush2.msra.mxu0 0.0
        %657 = vmatprep.subr.mxu0 0.0
        %658 = vmatpush2.msra.mxu0 0.0
        %659 = vmatprep.subr.mxu0 0.0
        %660 = vmatpush2.msra.mxu0 0.0
        %661 = vmatprep.subr.mxu0 0.0
        %662 = vmatpush2.msra.mxu0 0.0
        %663 = vmatprep.subr.mxu0 0.0
        %664 = vmatpush2.msra.mxu0 0.0
        %665 = vmatprep.subr.mxu0 0.0
        %666 = vmatpush2.msra.mxu0 0.0
        %667 = vmatprep.mubr.f32.mxu0 0.0
        %668 = vmatmul.mubr.f32.gmra.mxu0 %v602
        %v669 = vpop.f32.mrf.mxu0
        %v670 = vadd.f32 0.0, %v669
        %v671 = vpop.f32.mrf.mxu0
        %672 = vdwg.mxu0
        %v673 = vmax.f32 %v670, 1e-24
        %v674 = vrsqrt.pop %v673
        %v676 = vrot.slane %v674, 1
        %v678 = vmul.f32 %v670, %v676
        %v680 = vrot.slane %v678, 2
        %v682 = vadd.f32 %v678, %v680
        %v683 = vxor.u32 %v682, 2147483648
        %v684 = vmul.f32 %v683, 1.442695
        %v685 = vpow.pop %v684
        %v686 = vadd.f32 %v685, 1.0
        %v687 = vrcp.pop %v686
        %v688 = vmul.f32 1.0, %v687
        %v689 = vld [vmem:[%s352] sm:$0x1]
        %v690 = vmul.f32 %v688, %v689
        %691 = vst [vmem:[%s359] sm:$0x1] %v690
        %p692 = scmp.lt.s32.totalorder %s21, 1
        %s693 = scalar_select %p692, %s21, 1
        %p694 = scmp.lt.s32.totalorder %s22, 1
        %s695 = scalar_select %p694, %s22, 1
        %s696 = smul.addr %s693, 2
        %s697 = sadd.s32 %s695, %s696
        %s698 = scalar_lea.vmem %s6, %s697
        // Predicated region
        $region83: #{cca_forward.3} parent=77 // pred_check
          %p699 = pneg %p195
        $region84: #{cca_forward.3} parent=77 // pred_check_branch
          %701 = sbr.rel (%p699) target = $region86
        $region85: #{cca_forward.3} parent=77 // pred_region
          _
        $region86: #{cca_forward.3} parent=77 // pred_fallthru
          _
      $region78: #{cca_forward.3} parent=5 // pred_fallthru
        _
      %p702 = scmp.le.s32.totalorder 2, %s12
      // Predicated region
      $region87: #{cca_forward.3} parent=5 // pred_check
        %p703 = pneg %p702
      $region88: #{cca_forward.3} parent=5 // pred_check_branch
        %705 = sbr.rel (%p703) target = $region90
      $region89: #{cca_forward.3} parent=5 // pred_region
        %s706 = ssub.s32 %s12, 2
        // Predicated region
        $region91: #{cca_forward.3} parent=89 // pred_check
          %p707 = pneg %p201
        $region92: #{cca_forward.3} parent=89 // pred_check_branch
          %709 = sbr.rel (%p707) target = $region94
        $region93: #{cca_forward.3} parent=89 // pred_region
          %p710 = scmp.lt.s32.totalorder %s23, 1
          %s711 = scalar_select %p710, %s23, 1
          %p712 = scmp.lt.s32.totalorder %s24, 1
          %s713 = scalar_select %p712, %s24, 1
          %s714 = smul.addr %s711, 2
          %s715 = sadd.s32 %s713, %s714
          %s716 = scalar_lea.vmem %s6, %s715
        $region94: #{cca_forward.3} parent=89 // pred_fallthru
          _
      $region90: #{cca_forward.3} parent=5 // pred_fallthru
        _
    $region6: #{cca_forward.3} parent=1 // loop_footer
      %s16 = sadd.s32 1, %s12
    $region7: #{cca_forward.3} parent=1 // loop_footer_branch
      %11 = sbr.rel target = $region3
    $region8: #{cca_forward.3} parent=1 // loop_exit
      _

</llo_original>
